<compile_context>
chip_gen: v6e
topology: v6e:2x2x1
jax: 0.10.0
libtpu: 0.0.40
codegen_flags: <defaults>
</compile_context>

<pallas_src>
import jax
import jax.numpy as jnp
from jax.experimental import pallas as pl
from jax.experimental.pallas import tpu as pltpu

LANE = 128  # padded feature width for the hidden layers / weight lanes


def _round_up(x, m):
    return ((x + m - 1) // m) * m


def _cdiv(a, b):
    return (a + b - 1) // b


def dqn_kernel(x_ref, w1_ref, w23_ref, b_ref, o_ref):
    # fc1 + relu: bf16 MXU, f32 accumulate, f32 epilogue (cast obs in-kernel).
    x = x_ref[...].astype(jnp.bfloat16)                              # (TB, obs_dim)
    b = b_ref[...]                                                   # (3, 128) f32
    h1 = jnp.dot(x, w1_ref[...], preferred_element_type=jnp.float32) + b[0:1, :]
    h1 = jnp.maximum(h1, 0.0).astype(jnp.bfloat16)                   # (TB, 128)
    # fc2 + relu
    h2 = jnp.dot(h1, w23_ref[0], preferred_element_type=jnp.float32) + b[1:2, :]
    h2 = jnp.maximum(h2, 0.0).astype(jnp.bfloat16)                   # (TB, 128)
    # fc3 (no activation); only the real action columns are stored to HBM.
    out = jnp.dot(h2, w23_ref[1], preferred_element_type=jnp.float32) + b[2:3, :]
    o_ref[...] = out[:, : o_ref.shape[-1]].astype(o_ref.dtype)
    # For pure action selection one could fuse argmax over actions here and emit
    # (TB, 1) int32 instead, shrinking output traffic further.


def prepare_params(params):
    """One-time weight prep (hoisted out of the per-forward hot path):
    lane-pad to 128, cast weights to bf16, stack constants."""
    w1, b1 = params["w1"], params["b1"]
    w2, b2 = params["w2"], params["b2"]
    w3, b3 = params["w3"], params["b3"]
    obs_dim, hidden = w1.shape
    action_dim = w3.shape[1]
    assert hidden <= LANE and action_dim <= LANE

    def pad2(a, rows, cols):
        return jnp.pad(a, ((0, rows - a.shape[0]), (0, cols - a.shape[1])))

    w1p = pad2(w1, obs_dim, LANE).astype(jnp.bfloat16)               # (obs_dim, 128)
    w2p = pad2(w2, LANE, LANE).astype(jnp.bfloat16)                  # (128, 128)
    w3p = pad2(w3, LANE, LANE).astype(jnp.bfloat16)                  # (128, 128)
    w23 = jnp.stack([w2p, w3p])                                      # (2, 128, 128)
    bias = jnp.concatenate(
        [pad2(b1, 1, LANE), pad2(b2, 1, LANE), pad2(b3, 1, LANE)], axis=0
    ).astype(jnp.float32)                                            # (3, 128)
    return {"w1": w1p, "w23": w23, "b": bias, "action_dim": int(action_dim)}


def _choose_tile(batch, block_b):
    granule = 16 if batch >= 16 else 8   # keep bf16 intermediates sublane-packed
    if batch > block_b:
        n_tiles = _cdiv(batch, block_b)
    elif batch >= 512:
        n_tiles = 2   # >=2 grid steps so the "parallel" axis shards v7x's 2 TCs
    else:
        n_tiles = 1
    tb = _round_up(_cdiv(batch, n_tiles), granule)
    return min(tb, block_b)


def dqn_forward(obs, prepped, *, block_b=2048):
    """obs: (B, obs_dim) float32. prepped: output of prepare_params().
    Returns (B, action_dim) float32 Q-values."""
    obs = obs.astype(jnp.float32)
    B, obs_dim = obs.shape
    action_dim = prepped["action_dim"]
    w1p, w23, bias = prepped["w1"], prepped["w23"], prepped["b"]
    assert w1p.shape[0] == obs_dim

    TB = _choose_tile(B, block_b)
    grid = (_cdiv(B, TB),)                 # partial last block handled by Pallas masking
    const2 = lambda i: (0, 0)              # constants: same block every step -> VMEM-resident
    const3 = lambda i: (0, 0, 0)

    return pl.pallas_call(
        dqn_kernel,
        out_shape=jax.ShapeDtypeStruct((B, action_dim), jnp.float32),
        grid=grid,
        in_specs=[
            pl.BlockSpec((TB, obs_dim), lambda i: (i, 0)),   # obs streamed over batch
            pl.BlockSpec(w1p.shape, const2),
            pl.BlockSpec(w23.shape, const3),
            pl.BlockSpec(bias.shape, const2),
        ],
        out_specs=pl.BlockSpec((TB, action_dim), lambda i: (i, 0)),
        compiler_params=pltpu.CompilerParams(
            dimension_semantics=("parallel",),   # megacore sharding on v7x
        ),
    )(obs, w1p, w23, bias)


def init_params(key, obs_dim, action_dim, hidden=64):
    """Deterministic init matching nn.Linear shapes (stored transposed)."""
    ks = jax.random.split(key, 6)

    def linear(kw, kb, fan_in, fan_out):
        bound = 1.0 / jnp.sqrt(jnp.float32(fan_in))
        w = jax.random.uniform(kw, (fan_in, fan_out), jnp.float32, -bound, bound)
        b = jax.random.uniform(kb, (1, fan_out), jnp.float32, -bound, bound)
        return w, b

    w1, b1 = linear(ks[0], ks[1], obs_dim, hidden)
    w2, b2 = linear(ks[2], ks[3], hidden, hidden)
    w3, b3 = linear(ks[4], ks[5], hidden, action_dim)
    return {"w1": w1, "b1": b1, "w2": w2, "b2": b2, "w3": w3, "b3": b3}


if __name__ == "__main__":
    key = jax.random.PRNGKey(0)
    k_obs, k_par = jax.random.split(key)

    B, obs_dim, action_dim = 8, 8, 4
    obs = jax.random.normal(k_obs, (B, obs_dim), jnp.float32)
    params = init_params(k_par, obs_dim, action_dim)
    prepped = prepare_params(params)   # one-time weight prep, outside the hot path

    out = dqn_forward(obs, prepped)
    out = jax.block_until_ready(out)
    assert out.shape == (B, action_dim)

    # Reference in plain JAX with the same bf16-compute / f32-accumulate recipe.
    def ref(x, p):
        def lin(h, w, b):
            return jnp.dot(h.astype(jnp.bfloat16), w.astype(jnp.bfloat16),
                           preferred_element_type=jnp.float32) + b
        h = jnp.maximum(lin(x, p["w1"], p["b1"]), 0.0)
        h = jnp.maximum(lin(h, p["w2"], p["b2"]), 0.0)
        return lin(h, p["w3"], p["b3"])

    expected = ref(obs, params)
    err = jnp.max(jnp.abs(out - expected))
    assert jnp.allclose(out, expected, atol=1e-2, rtol=1e-2), f"max abs err {err}"

    # Also check against the pure-f32 reference with a bf16-appropriate tolerance.
    def ref_f32(x, p):
        h = jnp.maximum(x @ p["w1"] + p["b1"], 0.0)
        h = jnp.maximum(h @ p["w2"] + p["b2"], 0.0)
        return h @ p["w3"] + p["b3"]

    assert jnp.allclose(out, ref_f32(obs, params), atol=5e-2, rtol=5e-2)

    print("KERNEL_OK")
</pallas_src>

<mosaic_0001>
module attributes {stable_mosaic.version = 11 : i64} {
  func.func @dqn_kernel(%arg0: i32, %arg1: memref<8x8xf32, #tpu.memory_space<vmem>>, %arg2: memref<8x128xbf16, #tpu.memory_space<vmem>>, %arg3: memref<2x128x128xbf16, #tpu.memory_space<vmem>>, %arg4: memref<3x128xf32, #tpu.memory_space<vmem>>, %arg5: memref<8x4xf32, #tpu.memory_space<vmem>>) attributes {dimension_semantics = [#tpu.dimension_semantics<parallel>], iteration_bounds = array<i64: 1>, scalar_prefetch = 0 : i64, scratch_operands = 0 : i64, tpu.core_type = #tpu.core_type<tc>, window_params = [{transform_indices = @transform_0, window_bounds = array<i64: 8, 8>}, {pipeline_mode = #tpu.pipeline_mode<synchronous>, transform_indices = @transform_1, window_bounds = array<i64: 8, 128>}, {pipeline_mode = #tpu.pipeline_mode<synchronous>, transform_indices = @transform_2, window_bounds = array<i64: 2, 128, 128>}, {pipeline_mode = #tpu.pipeline_mode<synchronous>, transform_indices = @transform_3, window_bounds = array<i64: 3, 128>}, {transform_indices = @transform_4, window_bounds = array<i64: 8, 4>}]} {
    %c0 = arith.constant 0 : index
    %c0_0 = arith.constant 0 : index
    %0 = vector.load %arg1[%c0, %c0_0] : memref<8x8xf32, #tpu.memory_space<vmem>>, vector<8x8xf32>
    %1 = arith.truncf %0 : vector<8x8xf32> to vector<8x8xbf16>
    %c0_1 = arith.constant 0 : index
    %c0_2 = arith.constant 0 : index
    %2 = vector.load %arg4[%c0_1, %c0_2] : memref<3x128xf32, #tpu.memory_space<vmem>>, vector<3x128xf32>
    %c0_3 = arith.constant 0 : index
    %c0_4 = arith.constant 0 : index
    %3 = vector.load %arg2[%c0_3, %c0_4] : memref<8x128xbf16, #tpu.memory_space<vmem>>, vector<8x128xbf16>
    %cst = arith.constant dense<0.000000e+00> : vector<8x128xf32>
    %4 = tpu.matmul %1, %3, %cst {dimension_numbers = #tpu.dot_dimension_numbers<[1], [0], [0], [1], [0, 0, 1, 1], [], []>} : vector<8x8xbf16>, vector<8x128xbf16>, vector<8x128xf32> -> vector<8x128xf32>
    %5 = vector.extract_strided_slice %2 {offsets = [0, 0], sizes = [1, 128], strides = [1, 1]} : vector<3x128xf32> to vector<1x128xf32>
    %6 = vector.broadcast %5 : vector<1x128xf32> to vector<8x128xf32>
    %7 = arith.addf %4, %6 : vector<8x128xf32>
    %cst_5 = arith.constant 0.000000e+00 : f32
    %8 = vector.broadcast %cst_5 : f32 to vector<8x128xf32>
    %9 = arith.maximumf %7, %8 : vector<8x128xf32>
    %10 = arith.truncf %9 : vector<8x128xf32> to vector<8x128xbf16>
    %c0_6 = arith.constant 0 : index
    %c0_7 = arith.constant 0 : index
    %c0_8 = arith.constant 0 : index
    %11 = vector.load %arg3[%c0_6, %c0_7, %c0_8] : memref<2x128x128xbf16, #tpu.memory_space<vmem>>, vector<1x128x128xbf16>
    %12 = vector.shape_cast %11 : vector<1x128x128xbf16> to vector<128x128xbf16>
    %cst_9 = arith.constant dense<0.000000e+00> : vector<8x128xf32>
    %13 = tpu.matmul %10, %12, %cst_9 {dimension_numbers = #tpu.dot_dimension_numbers<[1], [0], [0], [1], [0, 0, 1, 1], [], []>} : vector<8x128xbf16>, vector<128x128xbf16>, vector<8x128xf32> -> vector<8x128xf32>
    %14 = vector.extract_strided_slice %2 {offsets = [1, 0], sizes = [1, 128], strides = [1, 1]} : vector<3x128xf32> to vector<1x128xf32>
    %15 = vector.broadcast %14 : vector<1x128xf32> to vector<8x128xf32>
    %16 = arith.addf %13, %15 : vector<8x128xf32>
    %cst_10 = arith.constant 0.000000e+00 : f32
    %17 = vector.broadcast %cst_10 : f32 to vector<8x128xf32>
    %18 = arith.maximumf %16, %17 : vector<8x128xf32>
    %19 = arith.truncf %18 : vector<8x128xf32> to vector<8x128xbf16>
    %c1 = arith.constant 1 : index
    %c0_11 = arith.constant 0 : index
    %c0_12 = arith.constant 0 : index
    %20 = vector.load %arg3[%c1, %c0_11, %c0_12] : memref<2x128x128xbf16, #tpu.memory_space<vmem>>, vector<1x128x128xbf16>
    %21 = vector.shape_cast %20 : vector<1x128x128xbf16> to vector<128x128xbf16>
    %cst_13 = arith.constant dense<0.000000e+00> : vector<8x128xf32>
    %22 = tpu.matmul %19, %21, %cst_13 {dimension_numbers = #tpu.dot_dimension_numbers<[1], [0], [0], [1], [0, 0, 1, 1], [], []>} : vector<8x128xbf16>, vector<128x128xbf16>, vector<8x128xf32> -> vector<8x128xf32>
    %23 = vector.extract_strided_slice %2 {offsets = [2, 0], sizes = [1, 128], strides = [1, 1]} : vector<3x128xf32> to vector<1x128xf32>
    %24 = vector.broadcast %23 : vector<1x128xf32> to vector<8x128xf32>
    %25 = arith.addf %22, %24 : vector<8x128xf32>
    %26 = vector.extract_strided_slice %25 {offsets = [0, 0], sizes = [8, 4], strides = [1, 1]} : vector<8x128xf32> to vector<8x4xf32>
    %c0_14 = arith.constant 0 : index
    %c0_15 = arith.constant 0 : index
    %27 = vector.load %arg5[%c0_14, %c0_15] : memref<8x4xf32, #tpu.memory_space<vmem>>, vector<8x4xf32>
    tpu.vector_store %arg5[%c0_14, %c0_15], %26 {strides = array<i32>} : memref<8x4xf32, #tpu.memory_space<vmem>>, vector<8x4xf32>,
    return
  }
  func.func @transform_0(%arg0: i32) -> (i32, i32) {
    %c0_i32 = arith.constant 0 : i32
    %c0_i32_0 = arith.constant 0 : i32
    return %arg0, %c0_i32 : i32, i32
  }
  func.func @transform_1(%arg0: i32) -> (i32, i32) {
    %c0_i32 = arith.constant 0 : i32
    %c0_i32_0 = arith.constant 0 : i32
    %c0_i32_1 = arith.constant 0 : i32
    return %c0_i32, %c0_i32_0 : i32, i32
  }
  func.func @transform_2(%arg0: i32) -> (i32, i32, i32) {
    %c0_i32 = arith.constant 0 : i32
    %c0_i32_0 = arith.constant 0 : i32
    %c0_i32_1 = arith.constant 0 : i32
    %c0_i32_2 = arith.constant 0 : i32
    return %c0_i32, %c0_i32_0, %c0_i32_1 : i32, i32, i32
  }
  func.func @transform_3(%arg0: i32) -> (i32, i32) {
    %c0_i32 = arith.constant 0 : i32
    %c0_i32_0 = arith.constant 0 : i32
    %c0_i32_1 = arith.constant 0 : i32
    return %c0_i32, %c0_i32_0 : i32, i32
  }
  func.func @transform_4(%arg0: i32) -> (i32, i32) {
    %c0_i32 = arith.constant 0 : i32
    %c0_i32_0 = arith.constant 0 : i32
    return %arg0, %c0_i32 : i32, i32
  }
}

</mosaic_0001>

<llo_original>
// kernel: tpu_custom_call.1
$region0: #{tpu_custom_call.1}
  #allocation0 [shape = 'u32[]', space=smem, size = 0x4, offset = 0x4, fixed_abs, tag = 'smem constant byte address 0x4 - core index']
  #allocation1 [shape = 'u32[144,128]{1,0:T(1,128)}', space=vmem, size = 0x12000, scoped, tag = 'internal scratch']
  %s0 = inlined_call_operand.hbm [shape: f32[8,8], index: 0, kind: input, shape index: {}]
  %s1 = inlined_call_operand.hbm [shape: bf16[8,128], index: 1, kind: input, shape index: {}]
  %s2 = inlined_call_operand.hbm [shape: bf16[2,128,128], index: 2, kind: input, shape index: {}]
  %s3 = inlined_call_operand.vmem [shape: f32[3,128], index: 3, kind: input, shape index: {}]
  %s4 = inlined_call_operand.vmem [shape: f32[8,4], index: 4, kind: output, shape index: {}]
  %s5 = sld [smem:[#allocation0]]
  $region38: #{tpu_custom_call.1} parent=0
    _
  %s7 = ssub.s32 1, %s5
  %s8 = scalar_select 0, %s7, %s5
  $region1: #{tpu_custom_call.1} parent=0
    #allocation2 [shape = 'u8[4096]{0}', space=vmem, size = 0x1000, scoped, tag = 'input window, operand 0, single buffered']
    #allocation3 [shape = 's32[1]{0}', space=sflag, size = 0x4, scoped, tag = 'scoped memory for tpu_custom_call.1']
    #allocation4 [shape = 'u8[2048]{0}', space=vmem, size = 0x800, scoped, tag = 'input window, operand 1, single buffered']
    #allocation5 [shape = 's32[1]{0}', space=sflag, size = 0x4, scoped, tag = 'scoped memory for tpu_custom_call.1']
    #allocation6 [shape = 'u8[65536]{0}', space=vmem, size = 0x10000, scoped, tag = 'input window, operand 2, single buffered']
    %9 = vsyncpa [#allocation3], 0
    %10 = vsyncpa [#allocation5], 0
    // Predicated region
    $region2: #{tpu_custom_call.1} parent=1 // pred_check
      _
    $region3: #{tpu_custom_call.1} parent=1 // pred_check_branch
      %12 = sbr.rel (0) target = $region5
    $region4: #{tpu_custom_call.1} parent=1 // pred_region
      %s14 = ssub.s32 128, 128
      %15 = vsyncadd [#allocation3], %s14
      %s17 = sshll.u32 [#allocation2], 4
      %s18 = int_to_ptr.vmem [resolvable:$true] %s17
      %20 = dma.hbm_to_vmem [thread:$0]  %s0, 128, %s18, [#allocation3]
    $region5: #{tpu_custom_call.1} parent=1 // pred_fallthru
      _
    // Predicated region
    $region6: #{tpu_custom_call.1} parent=1 // pred_check
      _
    $region7: #{tpu_custom_call.1} parent=1 // pred_check_branch
      %22 = sbr.rel (0) target = $region9
    $region8: #{tpu_custom_call.1} parent=1 // pred_region
      %s24 = ssub.s32 64, 64
      %25 = vsyncadd [#allocation5], %s24
      %s27 = sshll.u32 [#allocation4], 4
      %s28 = int_to_ptr.vmem [resolvable:$true] %s27
      %30 = dma.hbm_to_vmem [thread:$0]  %s1, 64, %s28, [#allocation5]
    $region9: #{tpu_custom_call.1} parent=1 // pred_fallthru
      _
    // Predicated region
    $region10: #{tpu_custom_call.1} parent=1 // pred_check
      _
    $region11: #{tpu_custom_call.1} parent=1 // pred_check_branch
      %32 = sbr.rel (0) target = $region13
    $region12: #{tpu_custom_call.1} parent=1 // pred_region
      %s34 = ssub.s32 2048, 2048
      %35 = vsyncadd [#allocation5], %s34
      %s36 = sshll.u32 [#allocation6], 4
      %s37 = int_to_ptr.vmem [resolvable:$true] %s36
      %42 = dma.hbm_to_vmem [thread:$0]  %s2, 2048, %s37, [#allocation5], 64, 64, 4
    $region13: #{tpu_custom_call.1} parent=1 // pred_fallthru
      _
    // Predicated region
    $region14: #{tpu_custom_call.1} parent=1 // pred_check
      _
    $region15: #{tpu_custom_call.1} parent=1 // pred_check_branch
      %44 = sbr.rel (0) target = $region17
    $region16: #{tpu_custom_call.1} parent=1 // pred_region
      _
    $region17: #{tpu_custom_call.1} parent=1 // pred_fallthru
      _
    // Predicated region
    $region18: #{tpu_custom_call.1} parent=1 // pred_check
      _
    $region19: #{tpu_custom_call.1} parent=1 // pred_check_branch
      %46 = sbr.rel (0) target = $region21
    $region20: #{tpu_custom_call.1} parent=1 // pred_region
      %47 = dma.done [#allocation3], 128
    $region21: #{tpu_custom_call.1} parent=1 // pred_fallthru
      _
    // Predicated region
    $region22: #{tpu_custom_call.1} parent=1 // pred_check
      _
    $region23: #{tpu_custom_call.1} parent=1 // pred_check_branch
      %49 = sbr.rel (0) target = $region25
    $region24: #{tpu_custom_call.1} parent=1 // pred_region
      %50 = dma.done [#allocation5], 64
    $region25: #{tpu_custom_call.1} parent=1 // pred_fallthru
      _
    // Predicated region
    $region26: #{tpu_custom_call.1} parent=1 // pred_check
      _
    $region27: #{tpu_custom_call.1} parent=1 // pred_check_branch
      %52 = sbr.rel (0) target = $region29
    $region28: #{tpu_custom_call.1} parent=1 // pred_region
      %53 = dma.done [#allocation5], 2048
    $region29: #{tpu_custom_call.1} parent=1 // pred_fallthru
      _
    %v55 = vld [vmem:[#allocation2] sm:$0xff]
    %v56 = vpack.c.bf16 %v55, %v55
    %v57 = vld [vmem:[%s3] sm:$0x7]
    %v58 = vld [vmem:[#allocation4] sm:$0xf]
    %v59 = vlaneseq
    %v60 = vshrl.u32 %v59, 7
    %v61 = vsub.s32 0, %v60
    %v62 = vrot.slane %v57, %v61
    %vm63 = vcmask 64512
    %v65 = vsel %vm63, %v56, 0
    %vm67 = vcmask 1043456
    %v69 = vsel %vm67, %v58, 0
    %71 = vmatprep.subr.bf16.mxu0 0
    %72 = vmatpush1.bf16.msra.mxu0 0
    %73 = vmatprep.subr.bf16.mxu0 0
    %74 = vmatpush1.bf16.msra.mxu0 0
    %75 = vmatprep.subr.bf16.mxu0 0
    %76 = vmatpush1.bf16.msra.mxu0 0
    %77 = vmatprep.subr.bf16.mxu0 0
    %78 = vmatpush1.bf16.msra.mxu0 0
    %79 = vmatprep.subr.bf16.mxu0 0
    %80 = vmatpush1.bf16.msra.mxu0 0
    %81 = vmatprep.subr.bf16.mxu0 0
    %82 = vmatpush1.bf16.msra.mxu0 0
    %83 = vmatprep.subr.bf16.mxu0 0
    %84 = vmatpush1.bf16.msra.mxu0 0
    %85 = vmatprep.subr.bf16.mxu0 0
    %86 = vmatpush1.bf16.msra.mxu0 %v69
    %87 = vmatprep.subr.bf16.mxu0 0
    %88 = vmatpush2.bf16.msra.mxu0 0
    %89 = vmatprep.subr.bf16.mxu0 0
    %90 = vmatpush2.bf16.msra.mxu0 0
    %91 = vmatprep.subr.bf16.mxu0 0
    %92 = vmatpush2.bf16.msra.mxu0 0
    %93 = vmatprep.subr.bf16.mxu0 0
    %94 = vmatpush2.bf16.msra.mxu0 0
    %95 = vmatprep.subr.bf16.mxu0 0
    %96 = vmatpush2.bf16.msra.mxu0 0
    %97 = vmatprep.subr.bf16.mxu0 0
    %98 = vmatpush2.bf16.msra.mxu0 0
    %99 = vmatprep.subr.bf16.mxu0 0
    %100 = vmatpush2.bf16.msra.mxu0 0
    %101 = vmatprep.subr.bf16.mxu0 0
    %102 = vmatpush2.bf16.msra.mxu0 0
    %103 = vmatprep.mubr.bf16.mxu0 0
    %104 = vmatmul.mubr.bf16.gmra.mxu0 %v65
    %v105 = vpop.f32.mrf.mxu0
    %v106 = vadd.f32 %v62, %v105
    %v107 = vpop.f32.mrf.mxu0
    %v108 = vpop.f32.mrf.mxu0
    %v109 = vpop.f32.mrf.mxu0
    %110 = vdwg.mxu0
    %v111 = vmax.f32 %v106, 0.0
    %v112 = vpack.c.bf16 %v111, %v111
    %v113 = vld [vmem:[#allocation6] sm:$0xf]
    %v114 = vld [vmem:[#allocation6 + $0x4] sm:$0xf]
    %v115 = vld [vmem:[#allocation6 + $0x8] sm:$0xf]
    %v116 = vld [vmem:[#allocation6 + $0xc] sm:$0xf]
    %v117 = vld [vmem:[#allocation6 + $0x10] sm:$0xf]
    %v118 = vld [vmem:[#allocation6 + $0x14] sm:$0xf]
    %v119 = vld [vmem:[#allocation6 + $0x18] sm:$0xf]
    %v120 = vld [vmem:[#allocation6 + $0x1c] sm:$0xf]
    %v121 = vld [vmem:[#allocation6 + $0x20] sm:$0xf]
    %v122 = vld [vmem:[#allocation6 + $0x24] sm:$0xf]
    %v123 = vld [vmem:[#allocation6 + $0x28] sm:$0xf]
    %v124 = vld [vmem:[#allocation6 + $0x2c] sm:$0xf]
    %v125 = vld [vmem:[#allocation6 + $0x30] sm:$0xf]
    %v126 = vld [vmem:[#allocation6 + $0x34] sm:$0xf]
    %v127 = vld [vmem:[#allocation6 + $0x38] sm:$0xf]
    %v128 = vld [vmem:[#allocation6 + $0x3c] sm:$0xf]
    %v129 = vlaneseq
    %v130 = vshrl.u32 %v129, 7
    %v131 = vsub.s32 1, %v130
    %v132 = vrot.slane %v57, %v131
    %v149 = vunpack.c.l.b16 %v113
    %v150 = vunpack.c.l.b16 %v114
    %v151 = vunpack.c.l.b16 %v115
    %v152 = vunpack.c.l.b16 %v116
    %v153 = vunpack.c.l.b16 %v117
    %v154 = vunpack.c.l.b16 %v118
    %v155 = vunpack.c.l.b16 %v119
    %v156 = vunpack.c.l.b16 %v120
    %v157 = vunpack.c.l.b16 %v121
    %v158 = vunpack.c.l.b16 %v122
    %v159 = vunpack.c.l.b16 %v123
    %v160 = vunpack.c.l.b16 %v124
    %v161 = vunpack.c.l.b16 %v125
    %v162 = vunpack.c.l.b16 %v126
    %v163 = vunpack.c.l.b16 %v127
    %v164 = vunpack.c.l.b16 %v128
    %v165 = vpack.c.b16 %v150, %v149
    %v166 = vpack.c.b16 %v152, %v151
    %v167 = vpack.c.b16 %v154, %v153
    %v168 = vpack.c.b16 %v156, %v155
    %v169 = vpack.c.b16 %v158, %v157
    %v170 = vpack.c.b16 %v160, %v159
    %v171 = vpack.c.b16 %v162, %v161
    %v172 = vpack.c.b16 %v164, %v163
    %181 = vmatprep.subr.bf16.mxu0 0
    %182 = vmatpush1.bf16.msra.mxu0 %v172
    %183 = vmatprep.subr.bf16.mxu0 0
    %184 = vmatpush1.bf16.msra.mxu0 %v171
    %185 = vmatprep.subr.bf16.mxu0 0
    %186 = vmatpush1.bf16.msra.mxu0 %v170
    %187 = vmatprep.subr.bf16.mxu0 0
    %188 = vmatpush1.bf16.msra.mxu0 %v169
    %189 = vmatprep.subr.bf16.mxu0 0
    %190 = vmatpush1.bf16.msra.mxu0 %v168
    %191 = vmatprep.subr.bf16.mxu0 0
    %192 = vmatpush1.bf16.msra.mxu0 %v167
    %193 = vmatprep.subr.bf16.mxu0 0
    %194 = vmatpush1.bf16.msra.mxu0 %v166
    %195 = vmatprep.subr.bf16.mxu0 0
    %196 = vmatpush1.bf16.msra.mxu0 %v165
    %197 = vmatprep.subr.bf16.mxu0 0
    %198 = vmatpush2.bf16.msra.mxu0 0
    %199 = vmatprep.subr.bf16.mxu0 0
    %200 = vmatpush2.bf16.msra.mxu0 0
    %201 = vmatprep.subr.bf16.mxu0 0
    %202 = vmatpush2.bf16.msra.mxu0 0
    %203 = vmatprep.subr.bf16.mxu0 0
    %204 = vmatpush2.bf16.msra.mxu0 0
    %205 = vmatprep.subr.bf16.mxu0 0
    %206 = vmatpush2.bf16.msra.mxu0 0
    %207 = vmatprep.subr.bf16.mxu0 0
    %208 = vmatpush2.bf16.msra.mxu0 0
    %209 = vmatprep.subr.bf16.mxu0 0
    %210 = vmatpush2.bf16.msra.mxu0 0
    %211 = vmatprep.subr.bf16.mxu0 0
    %212 = vmatpush2.bf16.msra.mxu0 0
    %213 = vmatprep.mubr.bf16.mxu0 0
    %214 = vmatmul.mubr.bf16.gmra.mxu0 %v112
    %v215 = vpop.f32.mrf.mxu0
    %v216 = vadd.f32 %v132, %v215
    %v217 = vpop.f32.mrf.mxu0
    %v218 = vpop.f32.mrf.mxu0
    %v219 = vpop.f32.mrf.mxu0
    %220 = vdwg.mxu0
    %v221 = vmax.f32 %v216, 0.0
    %v222 = vpack.c.bf16 %v221, %v221
    %s223 = scalar_lea.vmem [#allocation6], 64
    %v224 = vld [vmem:[%s223] sm:$0xf]
    %v225 = vld [vmem:[%s223 + $0x4] sm:$0xf]
    %v226 = vld [vmem:[%s223 + $0x8] sm:$0xf]
    %v227 = vld [vmem:[%s223 + $0xc] sm:$0xf]
    %v228 = vld [vmem:[%s223 + $0x10] sm:$0xf]
    %v229 = vld [vmem:[%s223 + $0x14] sm:$0xf]
    %v230 = vld [vmem:[%s223 + $0x18] sm:$0xf]
    %v231 = vld [vmem:[%s223 + $0x1c] sm:$0xf]
    %v232 = vld [vmem:[%s223 + $0x20] sm:$0xf]
    %v233 = vld [vmem:[%s223 + $0x24] sm:$0xf]
    %v234 = vld [vmem:[%s223 + $0x28] sm:$0xf]
    %v235 = vld [vmem:[%s223 + $0x2c] sm:$0xf]
    %v236 = vld [vmem:[%s223 + $0x30] sm:$0xf]
    %v237 = vld [vmem:[%s223 + $0x34] sm:$0xf]
    %v238 = vld [vmem:[%s223 + $0x38] sm:$0xf]
    %v239 = vld [vmem:[%s223 + $0x3c] sm:$0xf]
    %v240 = vlaneseq
    %v241 = vshrl.u32 %v240, 7
    %v242 = vsub.s32 2, %v241
    %v243 = vrot.slane %v57, %v242
    %v260 = vunpack.c.l.b16 %v224
    %v261 = vunpack.c.l.b16 %v225
    %v262 = vunpack.c.l.b16 %v226
    %v263 = vunpack.c.l.b16 %v227
    %v264 = vunpack.c.l.b16 %v228
    %v265 = vunpack.c.l.b16 %v229
    %v266 = vunpack.c.l.b16 %v230
    %v267 = vunpack.c.l.b16 %v231
    %v268 = vunpack.c.l.b16 %v232
    %v269 = vunpack.c.l.b16 %v233
    %v270 = vunpack.c.l.b16 %v234
    %v271 = vunpack.c.l.b16 %v235
    %v272 = vunpack.c.l.b16 %v236
    %v273 = vunpack.c.l.b16 %v237
    %v274 = vunpack.c.l.b16 %v238
    %v275 = vunpack.c.l.b16 %v239
    %v276 = vpack.c.b16 %v261, %v260
    %v277 = vpack.c.b16 %v263, %v262
    %v278 = vpack.c.b16 %v265, %v264
    %v279 = vpack.c.b16 %v267, %v266
    %v280 = vpack.c.b16 %v269, %v268
    %v281 = vpack.c.b16 %v271, %v270
    %v282 = vpack.c.b16 %v273, %v272
    %v283 = vpack.c.b16 %v275, %v274
    %292 = vmatprep.subr.bf16.mxu0 0
    %293 = vmatpush1.bf16.msra.mxu0 %v283
    %294 = vmatprep.subr.bf16.mxu0 0
    %295 = vmatpush1.bf16.msra.mxu0 %v282
    %296 = vmatprep.subr.bf16.mxu0 0
    %297 = vmatpush1.bf16.msra.mxu0 %v281
    %298 = vmatprep.subr.bf16.mxu0 0
    %299 = vmatpush1.bf16.msra.mxu0 %v280
    %300 = vmatprep.subr.bf16.mxu0 0
    %301 = vmatpush1.bf16.msra.mxu0 %v279
    %302 = vmatprep.subr.bf16.mxu0 0
    %303 = vmatpush1.bf16.msra.mxu0 %v278
    %304 = vmatprep.subr.bf16.mxu0 0
    %305 = vmatpush1.bf16.msra.mxu0 %v277
    %306 = vmatprep.subr.bf16.mxu0 0
    %307 = vmatpush1.bf16.msra.mxu0 %v276
    %308 = vmatprep.subr.bf16.mxu0 0
    %309 = vmatpush2.bf16.msra.mxu0 0
    %310 = vmatprep.subr.bf16.mxu0 0
    %311 = vmatpush2.bf16.msra.mxu0 0
    %312 = vmatprep.subr.bf16.mxu0 0
    %313 = vmatpush2.bf16.msra.mxu0 0
    %314 = vmatprep.subr.bf16.mxu0 0
    %315 = vmatpush2.bf16.msra.mxu0 0
    %316 = vmatprep.subr.bf16.mxu0 0
    %317 = vmatpush2.bf16.msra.mxu0 0
    %318 = vmatprep.subr.bf16.mxu0 0
    %319 = vmatpush2.bf16.msra.mxu0 0
    %320 = vmatprep.subr.bf16.mxu0 0
    %321 = vmatpush2.bf16.msra.mxu0 0
    %322 = vmatprep.subr.bf16.mxu0 0
    %323 = vmatpush2.bf16.msra.mxu0 0
    %324 = vmatprep.mubr.bf16.mxu0 0
    %325 = vmatmul.mubr.bf16.gmra.mxu0 %v222
    %v326 = vpop.f32.mrf.mxu0
    %v327 = vadd.f32 %v243, %v326
    %v328 = vpop.f32.mrf.mxu0
    %v329 = vpop.f32.mrf.mxu0
    %v330 = vpop.f32.mrf.mxu0
    %331 = vdwg.mxu0
    %vm332 = vcmask 31744
    %333 = vst.msk [vmem:[%s4] sm:$0xff] %vm332, %v327
    // Predicated region
    $region30: #{tpu_custom_call.1} parent=1 // pred_check
      _
    $region31: #{tpu_custom_call.1} parent=1 // pred_check_branch
      %335 = sbr.rel (0) target = $region33
    $region32: #{tpu_custom_call.1} parent=1 // pred_region
      _
    $region33: #{tpu_custom_call.1} parent=1 // pred_fallthru
      _
    // Predicated region
    $region34: #{tpu_custom_call.1} parent=1 // pred_check
      _
    $region35: #{tpu_custom_call.1} parent=1 // pred_check_branch
      %337 = sbr.rel (0) target = $region37
    $region36: #{tpu_custom_call.1} parent=1 // pred_region
      _
    $region37: #{tpu_custom_call.1} parent=1 // pred_fallthru
      _
    %338 = vsyncpa [#allocation3], 1
    %339 = vsyncpa [#allocation5], 1

</llo_original>
